<compile_context>
chip_gen: v6e
topology: v6e:2x2x1
jax: 0.10.0
libtpu: 0.0.40
codegen_flags: <defaults>
</compile_context>

<pallas_src>
import functools

import jax
import jax.numpy as jnp
from jax import lax
from jax.experimental import pallas as pl
from jax.experimental.pallas import tpu as pltpu


def _round_up(x: int, m: int) -> int:
    return ((x + m - 1) // m) * m


def _sublane_multiple(dtype) -> int:
    """Dtype-native sublane multiple (f32 -> 8, bf16 -> 16, int8/fp8 -> 32)."""
    itemsize = jnp.dtype(dtype).itemsize
    return max(8, 32 // max(itemsize, 1))


def _vmem_budget_bytes() -> int:
    """~3/4 of physical per-core VMEM (≈48 MiB on v7x, ≈96 MiB on v5e/v6e)."""
    try:
        cap = int(pltpu.get_tpu_info().vmem_capacity_bytes)
    except Exception:
        cap = 64 * 1024 * 1024          # conservative fallback: v7x physical VMEM
    return (cap * 3) // 4


def _attn_softmax_kernel(q_ref, d_ref, o_ref, *, ld_true: int, ld_pad: int):
    """One (batch, q-tile) grid step: softmax(q_tile @ dᵀ, axis=-1).

    q_ref: (1, TQ,  Hp)  native dtype VMEM block
    d_ref: (1, Ldp, Hp)  native dtype VMEM block, resident across q tiles
    o_ref: (1, TQ,  Ld)  caller dtype (true, un-padded key axis)
    """
    q = q_ref[0]                        # (TQ, Hp)
    d = d_ref[0]                        # (Ldp, Hp)

    # MXU matmul contracting H of both operands (trans-B semantics: no
    # materialized transpose of d); f32 accumulation regardless of input dtype.
    # For f32 inputs force full-precision passes so scores match a torch f32
    # reference; bf16 inputs keep the fast native single-pass path.
    prec = lax.Precision.HIGHEST if q.dtype == jnp.float32 else None
    scores = lax.dot_general(
        q, d,
        dimension_numbers=(((1,), (1,)), ((), ())),
        preferred_element_type=jnp.float32,
        precision=prec,
    )                                    # (TQ, Ldp) f32

    # Numerically stable softmax in f32. Exact division (torch.softmax parity).
    m = jnp.max(scores, axis=-1, keepdims=True)
    p = jnp.exp(scores - m)
    denom = jnp.sum(p, axis=-1, keepdims=True)
    if ld_pad > ld_true:                 # static (trace-time) condition
        # Padded key rows are exact zeros -> their scores are exactly 0 and
        # each contributes exp(-m) to the denominator. Subtract that exact
        # amount instead of running a full-width iota/compare/select mask.
        # Padded output columns hold garbage but are never stored (the output
        # block's key axis is the true Ld).
        pad = jnp.float32(ld_pad - ld_true)
        denom = jnp.maximum(denom - pad * jnp.exp(-m),
                            jnp.finfo(jnp.float32).tiny)
    probs = p / denom

    o_ref[0] = probs[:, :ld_true].astype(o_ref.dtype)


@functools.partial(jax.jit, static_argnames=("q_tile", "out_dtype"))
def attention_probs(q_emb: jax.Array, d_emb: jax.Array,
                    q_tile: int = 512, out_dtype=None) -> jax.Array:
    """softmax(q_emb @ d_emb.transpose(-2, -1), dim=-1) via a Pallas kernel.

    q_emb: [B, Lq, H], d_emb: [B, Ld, H]  ->  [B, Lq, Ld]
    """
    B, Lq, H = q_emb.shape
    Bd, Ld, Hd = d_emb.shape
    assert B == Bd and H == Hd, "batch / hidden dims must match"

    out_dt = jnp.dtype(out_dtype) if out_dtype is not None else jnp.dtype(q_emb.dtype)

    sub = _sublane_multiple(q_emb.dtype)
    Hp = _round_up(H, 128)               # lane axis of the contraction (zero-pad exact)
    Ldp = _round_up(Ld, 128)             # lane-dense MXU output width

    q_item = jnp.dtype(q_emb.dtype).itemsize
    d_item = jnp.dtype(d_emb.dtype).itemsize
    o_item = out_dt.itemsize

    single_buffer_d = hasattr(pl, "Buffered")
    d_bufs = 1 if single_buffer_d else 2

    def footprint(tq: int) -> int:
        return (2 * tq * Hp * q_item          # q blocks (double-buffered)
                + d_bufs * Ldp * Hp * d_item  # resident d block
                + 2 * tq * Ld * o_item        # out blocks (double-buffered)
                + 3 * tq * Ldp * 4)           # f32 scores / p / probs scratch

    budget = _vmem_budget_bytes()
    TQ = max(sub, min(_round_up(q_tile, sub), _round_up(Lq, sub)))
    while footprint(TQ) > budget and TQ > sub:
        TQ = max(sub, _round_up(TQ // 2, sub))
    # TODO(synk): if the d block alone blows the budget, fall back to an
    #             online-softmax Ld-tiled kernel (flash-style running max/sum).

    vmem_limit = int(min(budget, max(footprint(TQ) * 3 // 2, 32 * 1024 * 1024)))

    Lqp = _round_up(Lq, TQ)

    # Pad only when needed (skip wrapper HBM round trips for aligned shapes).
    q = q_emb if (Lqp, Hp) == (Lq, H) else jnp.pad(
        q_emb, ((0, 0), (0, Lqp - Lq), (0, Hp - H)))
    d = d_emb if (Ldp, Hp) == (Ld, H) else jnp.pad(
        d_emb, ((0, 0), (0, Ldp - Ld), (0, Hp - H)))

    n_q_tiles = Lqp // TQ

    # d only changes with the batch index -> single buffer frees VMEM on v7x.
    d_shape = (1, Ldp, Hp)
    d_index = lambda b, qi: (b, 0, 0)
    if single_buffer_d:
        try:
            d_spec = pl.BlockSpec(d_shape, d_index, pipeline_mode=pl.Buffered(1))
        except TypeError:               # older API without pipeline_mode
            d_spec = pl.BlockSpec(d_shape, d_index)
    else:
        d_spec = pl.BlockSpec(d_shape, d_index)

    # Megacore: shard on batch when there is enough of it, so the large d
    # block is fetched once per batch per core; otherwise split q tiles.
    dims = ("parallel", "arbitrary") if B >= 2 else ("parallel", "parallel")

    cost = pl.CostEstimate(
        flops=int(2 * B * Lqp * Ldp * Hp),
        transcendentals=int(B * Lqp * Ldp),
        bytes_accessed=int(q.size * q_item + d.size * d_item
                           + B * Lqp * Ld * o_item),
    )

    kernel = functools.partial(_attn_softmax_kernel, ld_true=Ld, ld_pad=Ldp)

    out = pl.pallas_call(
        kernel,
        out_shape=jax.ShapeDtypeStruct((B, Lqp, Ld), out_dt),
        grid_spec=pltpu.PrefetchScalarGridSpec(
            num_scalar_prefetch=0,
            grid=(B, n_q_tiles),
            in_specs=[
                # q tile: new block per (b, qi)
                pl.BlockSpec((1, TQ, Hp), lambda b, qi: (b, qi, 0)),
                # d: fully resident per batch, reused across q tiles
                d_spec,
            ],
            # key axis emitted at its true length -> no padded writeback/slice
            out_specs=pl.BlockSpec((1, TQ, Ld), lambda b, qi: (b, qi, 0)),
        ),
        compiler_params=pltpu.CompilerParams(
            dimension_semantics=dims,
            vmem_limit_bytes=vmem_limit,
        ),
        cost_estimate=cost,
    )(q, d)

    # Only the q padding (if any) needs stripping.
    return out if Lqp == Lq else out[:, :Lq, :]


class QDERAttentionWeights:
    """JAX/Pallas stand-in for BaseQDERModel's concrete behavior.

    Only get_attention_weights() does real math in the PyTorch base class; the
    rest is config bookkeeping, reproduced here for interface parity.
    """

    def __init__(self, pretrained: str = "synthetic-encoder",
                 use_scores: bool = True, use_entities: bool = True,
                 score_method: str = "linear"):
        self.pretrained = pretrained
        self.use_scores = use_scores
        self.use_entities = use_entities
        self.score_method = score_method
        self.config = {
            "pretrained": pretrained,
            "use_scores": use_scores,
            "use_entities": use_entities,
            "score_method": score_method,
        }

    def get_model_info(self):
        return {
            "model_type": self.__class__.__name__,
            **self.config,
            "num_parameters": 0,
            "trainable_parameters": 0,
        }

    def get_attention_weights(self, query_text_emb, doc_text_emb,
                              query_entity_emb=None, doc_entity_emb=None):
        attention_weights = {}
        attention_weights["text_attention"] = attention_probs(
            query_text_emb, doc_text_emb)
        if (query_entity_emb is not None and doc_entity_emb is not None
                and query_entity_emb.shape[1] > 0 and doc_entity_emb.shape[1] > 0):
            attention_weights["entity_attention"] = attention_probs(
                query_entity_emb, doc_entity_emb)
        return attention_weights


def _reference(q, d):
    s = jnp.einsum("bqh,bkh->bqk", q.astype(jnp.float32), d.astype(jnp.float32))
    return jax.nn.softmax(s, axis=-1)


if __name__ == "__main__":
    key = jax.random.PRNGKey(0)
    k1, k2, k3, k4 = jax.random.split(key, 4)

    B, SEQ, HIDDEN = 2, 8, 32      # text embeddings [B, seq_len, hidden]
    NUM_ENT, EMB = 4, 32           # entity embeddings [B, num_entities, emb_dim]

    query_text_emb = jax.random.normal(k1, (B, SEQ, HIDDEN), dtype=jnp.float32)
    doc_text_emb = jax.random.normal(k2, (B, SEQ, HIDDEN), dtype=jnp.float32)
    query_entity_emb = jax.random.normal(k3, (B, NUM_ENT, EMB), dtype=jnp.float32)
    doc_entity_emb = jax.random.normal(k4, (B, NUM_ENT, EMB), dtype=jnp.float32)

    model = QDERAttentionWeights()
    out = model.get_attention_weights(
        query_text_emb, doc_text_emb, query_entity_emb, doc_entity_emb)

    text_attn = jax.block_until_ready(out["text_attention"])
    entity_attn = jax.block_until_ready(out["entity_attention"])

    ref_text = _reference(query_text_emb, doc_text_emb)
    ref_ent = _reference(query_entity_emb, doc_entity_emb)

    assert text_attn.shape == (B, SEQ, SEQ)
    assert entity_attn.shape == (B, NUM_ENT, NUM_ENT)
    assert jnp.allclose(text_attn, ref_text, atol=2e-3, rtol=2e-3)
    assert jnp.allclose(entity_attn, ref_ent, atol=2e-3, rtol=2e-3)
    # Exact-division softmax: rows sum to 1 within f32 rounding.
    assert jnp.allclose(jnp.sum(text_attn, axis=-1), 1.0, atol=1e-3)
    assert jnp.allclose(jnp.sum(entity_attn, axis=-1), 1.0, atol=1e-3)

    print("KERNEL_OK")
</pallas_src>

<mosaic_0001>
module attributes {stable_mosaic.version = 11 : i64} {
  func.func @_attn_softmax_kernel(%arg0: i32, %arg1: i32, %arg2: memref<1x8x128xf32, #tpu.memory_space<vmem>>, %arg3: memref<1x128x128xf32, #tpu.memory_space<vmem>>, %arg4: memref<1x8x8xf32, #tpu.memory_space<vmem>>) attributes {dimension_semantics = [#tpu.dimension_semantics<parallel>, #tpu.dimension_semantics<arbitrary>], iteration_bounds = array<i64: 2, 1>, scalar_prefetch = 0 : i64, scratch_operands = 0 : i64, tpu.core_type = #tpu.core_type<tc>, window_params = [{transform_indices = @transform_0, window_bounds = array<i64: 1, 8, 128>}, {pipeline_mode = #tpu.pipeline_mode<synchronous>, transform_indices = @transform_1, window_bounds = array<i64: 1, 128, 128>}, {transform_indices = @transform_2, window_bounds = array<i64: 1, 8, 8>}]} {
    %c0 = arith.constant 0 : index
    %c0_0 = arith.constant 0 : index
    %c0_1 = arith.constant 0 : index
    %0 = vector.load %arg2[%c0, %c0_0, %c0_1] : memref<1x8x128xf32, #tpu.memory_space<vmem>>, vector<1x8x128xf32>
    %1 = vector.shape_cast %0 : vector<1x8x128xf32> to vector<8x128xf32>
    %c0_2 = arith.constant 0 : index
    %c0_3 = arith.constant 0 : index
    %c0_4 = arith.constant 0 : index
    %2 = vector.load %arg3[%c0_2, %c0_3, %c0_4] : memref<1x128x128xf32, #tpu.memory_space<vmem>>, vector<1x128x128xf32>
    %3 = vector.shape_cast %2 : vector<1x128x128xf32> to vector<128x128xf32>
    %cst = arith.constant dense<0.000000e+00> : vector<8x128xf32>
    %4 = tpu.matmul %1, %3, %cst {dimension_numbers = #tpu.dot_dimension_numbers<[1], [1], [0], [0], [0, 0, 1, 0], [], []>, precision = #tpu.contract_precision<fp32>} : vector<8x128xf32>, vector<128x128xf32>, vector<8x128xf32> -> vector<8x128xf32>
    %cst_5 = arith.constant dense<0xFF800000> : vector<8xf32>
    %5 = vector.multi_reduction <maximumf>, %4, %cst_5 [1] : vector<8x128xf32> to vector<8xf32>
    %6 = vector.shape_cast %5 : vector<8xf32> to vector<8x1xf32>
    %7 = vector.broadcast %6 : vector<8x1xf32> to vector<8x128xf32>
    %8 = arith.subf %4, %7 : vector<8x128xf32>
    %9 = math.exp %8 : vector<8x128xf32>
    %cst_6 = arith.constant dense<0.000000e+00> : vector<8xf32>
    %10 = vector.multi_reduction <add>, %9, %cst_6 [1] : vector<8x128xf32> to vector<8xf32>
    %11 = vector.shape_cast %10 : vector<8xf32> to vector<8x1xf32>
    %cst_7 = arith.constant 0.000000e+00 : f32
    %12 = vector.broadcast %cst_7 : f32 to vector<8x1xf32>
    %13 = arith.subf %12, %6 : vector<8x1xf32>
    %14 = math.exp %13 : vector<8x1xf32>
    %cst_8 = arith.constant 1.200000e+02 : f32
    %15 = vector.broadcast %cst_8 : f32 to vector<8x1xf32>
    %16 = arith.mulf %15, %14 : vector<8x1xf32>
    %17 = arith.subf %11, %16 : vector<8x1xf32>
    %cst_9 = arith.constant 1.17549435E-38 : f32
    %18 = vector.broadcast %cst_9 : f32 to vector<8x1xf32>
    %19 = arith.maximumf %17, %18 : vector<8x1xf32>
    %20 = vector.broadcast %19 : vector<8x1xf32> to vector<8x128xf32>
    %21 = arith.divf %9, %20 : vector<8x128xf32>
    %22 = vector.extract_strided_slice %21 {offsets = [0, 0], sizes = [8, 8], strides = [1, 1]} : vector<8x128xf32> to vector<8x8xf32>
    %c0_10 = arith.constant 0 : index
    %c0_11 = arith.constant 0 : index
    %c0_12 = arith.constant 0 : index
    %23 = vector.load %arg4[%c0_10, %c0_11, %c0_12] : memref<1x8x8xf32, #tpu.memory_space<vmem>>, vector<1x8x8xf32>
    %24 = vector.shape_cast %23 : vector<1x8x8xf32> to vector<8x8xf32>
    %25 = vector.shape_cast %22 : vector<8x8xf32> to vector<1x8x8xf32>
    tpu.vector_store %arg4[%c0_10, %c0_11, %c0_12], %25 {strides = array<i32>} : memref<1x8x8xf32, #tpu.memory_space<vmem>>, vector<1x8x8xf32>,
    return
  }
  func.func @transform_0(%arg0: i32, %arg1: i32) -> (i32, i32, i32) {
    %c0_i32 = arith.constant 0 : i32
    %c0_i32_0 = arith.constant 0 : i32
    return %arg0, %arg1, %c0_i32 : i32, i32, i32
  }
  func.func @transform_1(%arg0: i32, %arg1: i32) -> (i32, i32, i32) {
    %c0_i32 = arith.constant 0 : i32
    %c0_i32_0 = arith.constant 0 : i32
    %c0_i32_1 = arith.constant 0 : i32
    return %arg0, %c0_i32, %c0_i32_0 : i32, i32, i32
  }
  func.func @transform_2(%arg0: i32, %arg1: i32) -> (i32, i32, i32) {
    %c0_i32 = arith.constant 0 : i32
    %c0_i32_0 = arith.constant 0 : i32
    return %arg0, %arg1, %c0_i32 : i32, i32, i32
  }
}

</mosaic_0001>

<llo_original>
// kernel: attention_probs.1
$region0: #{attention_probs.1}
  #allocation0 [shape = 'u32[]', space=smem, size = 0x4, offset = 0x4, fixed_abs, tag = 'smem constant byte address 0x4 - core index']
  #allocation1 [shape = 'u32[144,128]{1,0:T(1,128)}', space=vmem, size = 0x12000, scoped, tag = 'internal scratch']
  %s0 = inlined_call_operand.vmem [shape: f32[2,8,128], index: 0, kind: input, shape index: {}]
  %s1 = inlined_call_operand.vmem [shape: f32[2,128,128], index: 1, kind: input, shape index: {}]
  %s2 = inlined_call_operand.hbm [shape: f32[2,8,8], index: 2, kind: output, shape index: {}]
  %s3 = sld [smem:[#allocation0]]
  $region41: #{attention_probs.1} parent=0
    _
  %s5 = ssub.s32 1, %s3
  %s6 = scalar_select 0, %s5, %s3
  $region1: #{attention_probs.1} parent=0
    #allocation2 [shape = 'u8[8192]{0}', space=vmem, size = 0x2000, scoped, tag = 'output window, operand 0']
    #allocation3 [shape = 's32[2]{0}', space=sflag, size = 0x8, scoped, tag = 'scoped memory for attention_probs.1']
    %7 = vsyncpa [#allocation3], 0
    %s8 = scalar_lea.sflag [#allocation3], 1
    %9 = vsyncpa %s8, 0
    loop: start=0, step=1, limit=4
    $region2: #{attention_probs.1} parent=1 // loop_pre_header
      _
    $region3: #{attention_probs.1} parent=1 // loop_header
      %s11 = sphi 0, %s15
      %p12 = scmp.ge.s32.totalorder %s11, 4
      %s18 = sphi 0, %s30
      %s19 = sphi 0, %s26
      %s20 = sphi 0, %s18
      %s21 = sphi 0, %s19
      %s22 = sphi 0, %s20
      %s23 = sphi 0, %s21
      %s35 = sphi 0, %s37
      %s38 = sphi 0, %s35
      %s39 = sphi 0, %s38
      %s55 = sphi 0, %s39
      %s61 = sphi 0, %s63
      %s64 = sphi 0, %s61
      %s65 = sphi 0, %s64
      %s81 = sphi 0, %s65
      %s89 = sphi 0, %s91
      %s92 = sphi 0, %s89
      %s93 = sphi 0, %s92
      %s109 = sphi 0, %s93
    $region4: #{attention_probs.1} parent=1 // loop_header_branch
      %14 = sbr.rel (%p12) target = $region8
    $region5: #{attention_probs.1} parent=1 // loop_body
      %s16 = ssub.s32 %s11, 1
      %s17 = ssub.s32 %s11, 2
      %s24 = sadd.s32 1, %s19
      %p25 = scmp.ge.s32.totalorder %s24, 1
      %s26 = scalar_select %p25, 0, %s24
      %s27 = sadd.s32 1, %s18
      %s28 = scalar_select %p25, %s27, %s18
      %p29 = scmp.ge.s32.totalorder %s28, 2
      %s30 = scalar_select %p29, 0, %s28
      %s31 = ssub.s32 %s18, %s30
      %s32 = ssub.s32 %s19, %s26
      %s33 = sor.u32 %s31, %s32
      %p34 = scmp.eq.s32.totalorder %s33, 0
      %s36 = sadd.s32 %s35, 1
      %s37 = scalar_select %p34, %s35, %s36
      %p40 = pneg %p34
      %p41 = scmp.eq.s32.totalorder %s11, 1
      %p42 = por %p40, %p41
      %p43 = scmp.ne.s32.totalorder %s35, %s38
      %p44 = scmp.eq.s32.totalorder %s11, 0
      %p45 = por %p43, %p44
      %p46 = scmp.ne.s32.totalorder %s35, %s38
      %p47 = scmp.eq.s32.totalorder %s16, 1
      %p48 = por %p46, %p47
      %p49 = scmp.ne.s32.totalorder %s38, %s39
      %p50 = scmp.eq.s32.totalorder %s16, 0
      %p51 = por %p49, %p50
      %p52 = scmp.ne.s32.totalorder %s38, %s39
      %p53 = scmp.eq.s32.totalorder %s17, 1
      %p54 = por %p52, %p53
      %p56 = scmp.ne.s32.totalorder %s39, %s55
      %p57 = scmp.eq.s32.totalorder %s17, 0
      %p58 = por %p56, %p57
      %s59 = ssub.s32 %s18, %s30
      %p60 = scmp.eq.s32.totalorder %s59, 0
      %s62 = sadd.s32 %s61, 1
      %s63 = scalar_select %p60, %s61, %s62
      %p66 = pneg %p60
      %p67 = scmp.eq.s32.totalorder %s11, 1
      %p68 = por %p66, %p67
      %p69 = scmp.ne.s32.totalorder %s61, %s64
      %p70 = scmp.eq.s32.totalorder %s11, 0
      %p71 = por %p69, %p70
      %p72 = scmp.ne.s32.totalorder %s61, %s64
      %p73 = scmp.eq.s32.totalorder %s16, 1
      %p74 = por %p72, %p73
      %p75 = scmp.ne.s32.totalorder %s64, %s65
      %p76 = scmp.eq.s32.totalorder %s16, 0
      %p77 = por %p75, %p76
      %p78 = scmp.ne.s32.totalorder %s64, %s65
      %p79 = scmp.eq.s32.totalorder %s17, 1
      %p80 = por %p78, %p79
      %p82 = scmp.ne.s32.totalorder %s65, %s81
      %p83 = scmp.eq.s32.totalorder %s17, 0
      %p84 = por %p82, %p83
      %s85 = ssub.s32 %s18, %s30
      %s86 = ssub.s32 %s19, %s26
      %s87 = sor.u32 %s85, %s86
      %p88 = scmp.eq.s32.totalorder %s87, 0
      %s90 = sadd.s32 %s89, 1
      %s91 = scalar_select %p88, %s89, %s90
      %p94 = pneg %p88
      %p95 = scmp.eq.s32.totalorder %s11, 1
      %p96 = por %p94, %p95
      %p97 = scmp.ne.s32.totalorder %s89, %s92
      %p98 = scmp.eq.s32.totalorder %s11, 0
      %p99 = por %p97, %p98
      %p100 = scmp.ne.s32.totalorder %s89, %s92
      %p101 = scmp.eq.s32.totalorder %s16, 1
      %p102 = por %p100, %p101
      %p103 = scmp.ne.s32.totalorder %s92, %s93
      %p104 = scmp.eq.s32.totalorder %s16, 0
      %p105 = por %p103, %p104
      %p106 = scmp.ne.s32.totalorder %s92, %s93
      %p107 = scmp.eq.s32.totalorder %s17, 1
      %p108 = por %p106, %p107
      %p110 = scmp.ne.s32.totalorder %s93, %s109
      %p111 = scmp.eq.s32.totalorder %s17, 0
      %p112 = por %p110, %p111
      %p113 = scmp.le.s32.totalorder 1, %s11
      %p114 = scmp.lt.s32.totalorder %s11, 3
      %p115 = pnand %p113, %p114
      %p116 = pneg %p115
      // Predicated region
      $region9: #{attention_probs.1} parent=5 // pred_check
        _
      $region10: #{attention_probs.1} parent=5 // pred_check_branch
        %118 = sbr.rel (%p115) target = $region12
      $region11: #{attention_probs.1} parent=5 // pred_region
        %s119 = ssub.s32 %s11, 1
        // Predicated region
        $region13: #{attention_probs.1} parent=11 // pred_check
          %p120 = pneg %p77
        $region14: #{attention_probs.1} parent=11 // pred_check_branch
          %122 = sbr.rel (%p120) target = $region16
        $region15: #{attention_probs.1} parent=11 // pred_region
          %p123 = scmp.lt.s32.totalorder %s20, 1
          %s124 = scalar_select %p123, %s20, 1
          %s125 = smul.addr %s124, 16
          %s126 = smul.addr %s125, 8
          %s127 = scalar_lea.vmem %s1, %s126
        $region16: #{attention_probs.1} parent=11 // pred_fallthru
          _
      $region12: #{attention_probs.1} parent=5 // pred_fallthru
        _
      %p128 = scmp.lt.s32.totalorder %s11, 2
      // Predicated region
      $region17: #{attention_probs.1} parent=5 // pred_check
        %p129 = pneg %p128
      $region18: #{attention_probs.1} parent=5 // pred_check_branch
        %131 = sbr.rel (%p129) target = $region20
      $region19: #{attention_probs.1} parent=5 // pred_region
        // Predicated region
        $region21: #{attention_probs.1} parent=19 // pred_check
          %p132 = pneg %p45
        $region22: #{attention_probs.1} parent=19 // pred_check_branch
          %134 = sbr.rel (%p132) target = $region24
        $region23: #{attention_probs.1} parent=19 // pred_region
          %p135 = scmp.lt.s32.totalorder %s18, 1
          %s136 = scalar_select %p135, %s18, 1
          %p137 = scmp.lt.s32.totalorder %s19, 0
          %s138 = scalar_select %p137, %s19, 0
          %s139 = sadd.s32 %s138, %s136
          %s140 = smul.addr %s139, 8
          %s141 = scalar_lea.vmem %s0, %s140
        $region24: #{attention_probs.1} parent=19 // pred_fallthru
          _
      $region20: #{attention_probs.1} parent=5 // pred_fallthru
        _
      %p142 = scmp.le.s32.totalorder 1, %s11
      %p143 = scmp.lt.s32.totalorder %s11, 3
      %p144 = pnand %p142, %p143
      %p145 = pneg %p144
      // Predicated region
      $region25: #{attention_probs.1} parent=5 // pred_check
        _
      $region26: #{attention_probs.1} parent=5 // pred_check_branch
        %147 = sbr.rel (%p144) target = $region28
      $region27: #{attention_probs.1} parent=5 // pred_region
        %s148 = ssub.s32 %s11, 1
        %p149 = scmp.lt.s32.totalorder %s20, 1
        %s150 = scalar_select %p149, %s20, 1
        %p151 = scmp.lt.s32.totalorder %s21, 0
        %s152 = scalar_select %p151, %s21, 0
        %s153 = sadd.s32 %s152, %s150
        %s154 = smul.addr %s153, 8
        %s155 = scalar_lea.vmem %s0, %s154
        %p156 = pneg %p51
        %p157 = pneg %p48
        %p158 = scmp.lt.s32.totalorder %s20, 1
        %s159 = scalar_select %p158, %s20, 1
        %s160 = smul.addr %s159, 16
        %s161 = smul.addr %s160, 8
        %s162 = scalar_lea.vmem %s1, %s161
        %p163 = pneg %p77
        %p164 = pneg %p74
        %p165 = pneg %p105
        %p166 = pneg %p102
        %s167 = sand.u32 %s92, 1
        %s168 = scalar_lea.sflag [#allocation3], %s167
        %s169 = sand.u32 %s92, 1
        %s170 = smul.addr %s169, 8
        %s171 = scalar_lea.vmem [#allocation2], %s170
        %p172 = scmp.lt.s32.totalorder %s20, 1
        %s173 = scalar_select %p172, %s20, 1
        %p174 = scmp.lt.s32.totalorder %s21, 0
        %s175 = scalar_select %p174, %s21, 0
        %s176 = sadd.s32 %s175, %s173
        %s177 = smul.addr %s176, 8
        %s178 = scalar_lea.vmem %s0, %s177
        %p179 = scmp.lt.s32.totalorder %s20, 1
        %s180 = scalar_select %p179, %s20, 1
        %s181 = smul.addr %s180, 16
        %s182 = smul.addr %s181, 8
        %s183 = scalar_lea.vmem %s1, %s182
        %v184 = vld [vmem:[%s178] sm:$0xff]
        %v185 = vld [vmem:[%s183] sm:$0xff]
        %v186 = vld [vmem:[%s183 + $0x8] sm:$0xff]
        %v187 = vld [vmem:[%s183 + $0x10] sm:$0xff]
        %v188 = vld [vmem:[%s183 + $0x18] sm:$0xff]
        %v189 = vld [vmem:[%s183 + $0x20] sm:$0xff]
        %v190 = vld [vmem:[%s183 + $0x28] sm:$0xff]
        %v191 = vld [vmem:[%s183 + $0x30] sm:$0xff]
        %v192 = vld [vmem:[%s183 + $0x38] sm:$0xff]
        %v193 = vld [vmem:[%s183 + $0x40] sm:$0xff]
        %v194 = vld [vmem:[%s183 + $0x48] sm:$0xff]
        %v195 = vld [vmem:[%s183 + $0x50] sm:$0xff]
        %v196 = vld [vmem:[%s183 + $0x58] sm:$0xff]
        %v197 = vld [vmem:[%s183 + $0x60] sm:$0xff]
        %v198 = vld [vmem:[%s183 + $0x68] sm:$0xff]
        %v199 = vld [vmem:[%s183 + $0x70] sm:$0xff]
        %v200 = vld [vmem:[%s183 + $0x78] sm:$0xff]
        %201 = vmatprep.subr.mxu0 0.0
        %v202 = vand.u32 %v200, 4294901760
        %203 = vmatpush1.xpose.msra.mxu0 %v202
        %204 = vmatprep.subr.mxu0 0.0
        %v205 = vand.u32 %v199, 4294901760
        %206 = vmatpush1.xpose.msra.mxu0 %v205
        %207 = vmatprep.subr.mxu0 0.0
        %v208 = vand.u32 %v198, 4294901760
        %209 = vmatpush1.xpose.msra.mxu0 %v208
        %210 = vmatprep.subr.mxu0 0.0
        %v211 = vand.u32 %v197, 4294901760
        %212 = vmatpush1.xpose.msra.mxu0 %v211
        %213 = vmatprep.subr.mxu0 0.0
        %v214 = vand.u32 %v196, 4294901760
        %215 = vmatpush1.xpose.msra.mxu0 %v214
        %216 = vmatprep.subr.mxu0 0.0
        %v217 = vand.u32 %v195, 4294901760
        %218 = vmatpush1.xpose.msra.mxu0 %v217
        %219 = vmatprep.subr.mxu0 0.0
        %v220 = vand.u32 %v194, 4294901760
        %221 = vmatpush1.xpose.msra.mxu0 %v220
        %222 = vmatprep.subr.mxu0 0.0
        %v223 = vand.u32 %v193, 4294901760
        %224 = vmatpush1.xpose.msra.mxu0 %v223
        %225 = vmatprep.subr.mxu0 0.0
        %v226 = vand.u32 %v192, 4294901760
        %227 = vmatpush1.xpose.msra.mxu0 %v226
        %228 = vmatprep.subr.mxu0 0.0
        %v229 = vand.u32 %v191, 4294901760
        %230 = vmatpush1.xpose.msra.mxu0 %v229
        %231 = vmatprep.subr.mxu0 0.0
        %v232 = vand.u32 %v190, 4294901760
        %233 = vmatpush1.xpose.msra.mxu0 %v232
        %234 = vmatprep.subr.mxu0 0.0
        %v235 = vand.u32 %v189, 4294901760
        %236 = vmatpush1.xpose.msra.mxu0 %v235
        %237 = vmatprep.subr.mxu0 0.0
        %v238 = vand.u32 %v188, 4294901760
        %239 = vmatpush1.xpose.msra.mxu0 %v238
        %240 = vmatprep.subr.mxu0 0.0
        %v241 = vand.u32 %v187, 4294901760
        %242 = vmatpush1.xpose.msra.mxu0 %v241
        %243 = vmatprep.subr.mxu0 0.0
        %v244 = vand.u32 %v186, 4294901760
        %245 = vmatpush1.xpose.msra.mxu0 %v244
        %246 = vmatprep.subr.mxu0 0.0
        %v247 = vand.u32 %v185, 4294901760
        %248 = vmatpush1.xpose.msra.mxu0 %v247
        %249 = vmatprep.subr.mxu0 0.0
        %250 = vmatpush2.xpose.msra.mxu0 0.0
        %251 = vmatprep.subr.mxu0 0.0
        %252 = vmatpush2.xpose.msra.mxu0 0.0
        %253 = vmatprep.subr.mxu0 0.0
        %254 = vmatpush2.xpose.msra.mxu0 0.0
        %255 = vmatprep.subr.mxu0 0.0
        %256 = vmatpush2.xpose.msra.mxu0 0.0
        %257 = vmatprep.subr.mxu0 0.0
        %258 = vmatpush2.xpose.msra.mxu0 0.0
        %259 = vmatprep.subr.mxu0 0.0
        %260 = vmatpush2.xpose.msra.mxu0 0.0
        %261 = vmatprep.subr.mxu0 0.0
        %262 = vmatpush2.xpose.msra.mxu0 0.0
        %263 = vmatprep.subr.mxu0 0.0
        %264 = vmatpush2.xpose.msra.mxu0 0.0
        %265 = vmatprep.subr.mxu0 0.0
        %266 = vmatpush2.xpose.msra.mxu0 0.0
        %267 = vmatprep.subr.mxu0 0.0
        %268 = vmatpush2.xpose.msra.mxu0 0.0
        %269 = vmatprep.subr.mxu0 0.0
        %270 = vmatpush2.xpose.msra.mxu0 0.0
        %271 = vmatprep.subr.mxu0 0.0
        %272 = vmatpush2.xpose.msra.mxu0 0.0
        %273 = vmatprep.subr.mxu0 0.0
        %274 = vmatpush2.xpose.msra.mxu0 0.0
        %275 = vmatprep.subr.mxu0 0.0
        %276 = vmatpush2.xpose.msra.mxu0 0.0
        %277 = vmatprep.subr.mxu0 0.0
        %278 = vmatpush2.xpose.msra.mxu0 0.0
        %279 = vmatprep.subr.mxu0 0.0
        %280 = vmatpush2.xpose.msra.mxu0 0.0
        %281 = vmatprep.mubr.f32.mxu0 0.0
        %v282 = vand.u32 %v184, 4294901760
        %v283 = vsub.f32 %v184, %v282
        %v284 = vand.u32 %v283, 4294901760
        %v285 = vsub.f32 %v283, %v284
        %v286 = vand.u32 %v285, 4294901760
        %287 = vmatmul.mubr.f32.gmra.mxu0 %v286
        %v288 = vpop.f32.mrf.mxu0
        %v289 = vadd.f32 0.0, %v288
        %v290 = vpop.f32.mrf.mxu0
        %291 = vdwg.mxu0
        %292 = vmatprep.subr.mxu0 0.0
        %v293 = vand.u32 %v200, 4294901760
        %v294 = vsub.f32 %v200, %v293
        %v295 = vand.u32 %v294, 4294901760
        %v296 = vsub.f32 %v294, %v295
        %v297 = vand.u32 %v296, 4294901760
        %298 = vmatpush1.xpose.msra.mxu0 %v297
        %299 = vmatprep.subr.mxu0 0.0
        %v300 = vand.u32 %v199, 4294901760
        %v301 = vsub.f32 %v199, %v300
        %v302 = vand.u32 %v301, 4294901760
        %v303 = vsub.f32 %v301, %v302
        %v304 = vand.u32 %v303, 4294901760
        %305 = vmatpush1.xpose.msra.mxu0 %v304
        %306 = vmatprep.subr.mxu0 0.0
        %v307 = vand.u32 %v198, 4294901760
        %v308 = vsub.f32 %v198, %v307
        %v309 = vand.u32 %v308, 4294901760
        %v310 = vsub.f32 %v308, %v309
        %v311 = vand.u32 %v310, 4294901760
        %312 = vmatpush1.xpose.msra.mxu0 %v311
        %313 = vmatprep.subr.mxu0 0.0
        %v314 = vand.u32 %v197, 4294901760
        %v315 = vsub.f32 %v197, %v314
        %v316 = vand.u32 %v315, 4294901760
        %v317 = vsub.f32 %v315, %v316
        %v318 = vand.u32 %v317, 4294901760
        %319 = vmatpush1.xpose.msra.mxu0 %v318
        %320 = vmatprep.subr.mxu0 0.0
        %v321 = vand.u32 %v196, 4294901760
        %v322 = vsub.f32 %v196, %v321
        %v323 = vand.u32 %v322, 4294901760
        %v324 = vsub.f32 %v322, %v323
        %v325 = vand.u32 %v324, 4294901760
        %326 = vmatpush1.xpose.msra.mxu0 %v325
        %327 = vmatprep.subr.mxu0 0.0
        %v328 = vand.u32 %v195, 4294901760
        %v329 = vsub.f32 %v195, %v328
        %v330 = vand.u32 %v329, 4294901760
        %v331 = vsub.f32 %v329, %v330
        %v332 = vand.u32 %v331, 4294901760
        %333 = vmatpush1.xpose.msra.mxu0 %v332
        %334 = vmatprep.subr.mxu0 0.0
        %v335 = vand.u32 %v194, 4294901760
        %v336 = vsub.f32 %v194, %v335
        %v337 = vand.u32 %v336, 4294901760
        %v338 = vsub.f32 %v336, %v337
        %v339 = vand.u32 %v338, 4294901760
        %340 = vmatpush1.xpose.msra.mxu0 %v339
        %341 = vmatprep.subr.mxu0 0.0
        %v342 = vand.u32 %v193, 4294901760
        %v343 = vsub.f32 %v193, %v342
        %v344 = vand.u32 %v343, 4294901760
        %v345 = vsub.f32 %v343, %v344
        %v346 = vand.u32 %v345, 4294901760
        %347 = vmatpush1.xpose.msra.mxu0 %v346
        %348 = vmatprep.subr.mxu0 0.0
        %v349 = vand.u32 %v192, 4294901760
        %v350 = vsub.f32 %v192, %v349
        %v351 = vand.u32 %v350, 4294901760
        %v352 = vsub.f32 %v350, %v351
        %v353 = vand.u32 %v352, 4294901760
        %354 = vmatpush1.xpose.msra.mxu0 %v353
        %355 = vmatprep.subr.mxu0 0.0
        %v356 = vand.u32 %v191, 4294901760
        %v357 = vsub.f32 %v191, %v356
        %v358 = vand.u32 %v357, 4294901760
        %v359 = vsub.f32 %v357, %v358
        %v360 = vand.u32 %v359, 4294901760
        %361 = vmatpush1.xpose.msra.mxu0 %v360
        %362 = vmatprep.subr.mxu0 0.0
        %v363 = vand.u32 %v190, 4294901760
        %v364 = vsub.f32 %v190, %v363
        %v365 = vand.u32 %v364, 4294901760
        %v366 = vsub.f32 %v364, %v365
        %v367 = vand.u32 %v366, 4294901760
        %368 = vmatpush1.xpose.msra.mxu0 %v367
        %369 = vmatprep.subr.mxu0 0.0
        %v370 = vand.u32 %v189, 4294901760
        %v371 = vsub.f32 %v189, %v370
        %v372 = vand.u32 %v371, 4294901760
        %v373 = vsub.f32 %v371, %v372
        %v374 = vand.u32 %v373, 4294901760
        %375 = vmatpush1.xpose.msra.mxu0 %v374
        %376 = vmatprep.subr.mxu0 0.0
        %v377 = vand.u32 %v188, 4294901760
        %v378 = vsub.f32 %v188, %v377
        %v379 = vand.u32 %v378, 4294901760
        %v380 = vsub.f32 %v378, %v379
        %v381 = vand.u32 %v380, 4294901760
        %382 = vmatpush1.xpose.msra.mxu0 %v381
        %383 = vmatprep.subr.mxu0 0.0
        %v384 = vand.u32 %v187, 4294901760
        %v385 = vsub.f32 %v187, %v384
        %v386 = vand.u32 %v385, 4294901760
        %v387 = vsub.f32 %v385, %v386
        %v388 = vand.u32 %v387, 4294901760
        %389 = vmatpush1.xpose.msra.mxu0 %v388
        %390 = vmatprep.subr.mxu0 0.0
        %v391 = vand.u32 %v186, 4294901760
        %v392 = vsub.f32 %v186, %v391
        %v393 = vand.u32 %v392, 4294901760
        %v394 = vsub.f32 %v392, %v393
        %v395 = vand.u32 %v394, 4294901760
        %396 = vmatpush1.xpose.msra.mxu0 %v395
        %397 = vmatprep.subr.mxu0 0.0
        %v398 = vand.u32 %v185, 4294901760
        %v399 = vsub.f32 %v185, %v398
        %v400 = vand.u32 %v399, 4294901760
        %v401 = vsub.f32 %v399, %v400
        %v402 = vand.u32 %v401, 4294901760
        %403 = vmatpush1.xpose.msra.mxu0 %v402
        %404 = vmatprep.subr.mxu0 0.0
        %405 = vmatpush2.xpose.msra.mxu0 0.0
        %406 = vmatprep.subr.mxu0 0.0
        %407 = vmatpush2.xpose.msra.mxu0 0.0
        %408 = vmatprep.subr.mxu0 0.0
        %409 = vmatpush2.xpose.msra.mxu0 0.0
        %410 = vmatprep.subr.mxu0 0.0
        %411 = vmatpush2.xpose.msra.mxu0 0.0
        %412 = vmatprep.subr.mxu0 0.0
        %413 = vmatpush2.xpose.msra.mxu0 0.0
        %414 = vmatprep.subr.mxu0 0.0
        %415 = vmatpush2.xpose.msra.mxu0 0.0
        %416 = vmatprep.subr.mxu0 0.0
        %417 = vmatpush2.xpose.msra.mxu0 0.0
        %418 = vmatprep.subr.mxu0 0.0
        %419 = vmatpush2.xpose.msra.mxu0 0.0
        %420 = vmatprep.subr.mxu0 0.0
        %421 = vmatpush2.xpose.msra.mxu0 0.0
        %422 = vmatprep.subr.mxu0 0.0
        %423 = vmatpush2.xpose.msra.mxu0 0.0
        %424 = vmatprep.subr.mxu0 0.0
        %425 = vmatpush2.xpose.msra.mxu0 0.0
        %426 = vmatprep.subr.mxu0 0.0
        %427 = vmatpush2.xpose.msra.mxu0 0.0
        %428 = vmatprep.subr.mxu0 0.0
        %429 = vmatpush2.xpose.msra.mxu0 0.0
        %430 = vmatprep.subr.mxu0 0.0
        %431 = vmatpush2.xpose.msra.mxu0 0.0
        %432 = vmatprep.subr.mxu0 0.0
        %433 = vmatpush2.xpose.msra.mxu0 0.0
        %434 = vmatprep.subr.mxu0 0.0
        %435 = vmatpush2.xpose.msra.mxu0 0.0
        %436 = vmatprep.mubr.f32.mxu0 0.0
        %v437 = vand.u32 %v184, 4294901760
        %438 = vmatmul.mubr.f32.gmra.mxu0 %v437
        %v439 = vpop.f32.mrf.mxu0
        %v440 = vadd.f32 %v289, %v439
        %v441 = vpop.f32.mrf.mxu0
        %442 = vdwg.mxu0
        %443 = vmatprep.subr.mxu0 0.0
        %v444 = vand.u32 %v200, 4294901760
        %v445 = vsub.f32 %v200, %v444
        %446 = vmatpush1.xpose.msra.mxu0 %v445
        %447 = vmatprep.subr.mxu0 0.0
        %v448 = vand.u32 %v199, 4294901760
        %v449 = vsub.f32 %v199, %v448
        %450 = vmatpush1.xpose.msra.mxu0 %v449
        %451 = vmatprep.subr.mxu0 0.0
        %v452 = vand.u32 %v198, 4294901760
        %v453 = vsub.f32 %v198, %v452
        %454 = vmatpush1.xpose.msra.mxu0 %v453
        %455 = vmatprep.subr.mxu0 0.0
        %v456 = vand.u32 %v197, 4294901760
        %v457 = vsub.f32 %v197, %v456
        %458 = vmatpush1.xpose.msra.mxu0 %v457
        %459 = vmatprep.subr.mxu0 0.0
        %v460 = vand.u32 %v196, 4294901760
        %v461 = vsub.f32 %v196, %v460
        %462 = vmatpush1.xpose.msra.mxu0 %v461
        %463 = vmatprep.subr.mxu0 0.0
        %v464 = vand.u32 %v195, 4294901760
        %v465 = vsub.f32 %v195, %v464
        %466 = vmatpush1.xpose.msra.mxu0 %v465
        %467 = vmatprep.subr.mxu0 0.0
        %v468 = vand.u32 %v194, 4294901760
        %v469 = vsub.f32 %v194, %v468
        %470 = vmatpush1.xpose.msra.mxu0 %v469
        %471 = vmatprep.subr.mxu0 0.0
        %v472 = vand.u32 %v193, 4294901760
        %v473 = vsub.f32 %v193, %v472
        %474 = vmatpush1.xpose.msra.mxu0 %v473
        %475 = vmatprep.subr.mxu0 0.0
        %v476 = vand.u32 %v192, 4294901760
        %v477 = vsub.f32 %v192, %v476
        %478 = vmatpush1.xpose.msra.mxu0 %v477
        %479 = vmatprep.subr.mxu0 0.0
        %v480 = vand.u32 %v191, 4294901760
        %v481 = vsub.f32 %v191, %v480
        %482 = vmatpush1.xpose.msra.mxu0 %v481
        %483 = vmatprep.subr.mxu0 0.0
        %v484 = vand.u32 %v190, 4294901760
        %v485 = vsub.f32 %v190, %v484
        %486 = vmatpush1.xpose.msra.mxu0 %v485
        %487 = vmatprep.subr.mxu0 0.0
        %v488 = vand.u32 %v189, 4294901760
        %v489 = vsub.f32 %v189, %v488
        %490 = vmatpush1.xpose.msra.mxu0 %v489
        %491 = vmatprep.subr.mxu0 0.0
        %v492 = vand.u32 %v188, 4294901760
        %v493 = vsub.f32 %v188, %v492
        %494 = vmatpush1.xpose.msra.mxu0 %v493
        %495 = vmatprep.subr.mxu0 0.0
        %v496 = vand.u32 %v187, 4294901760
        %v497 = vsub.f32 %v187, %v496
        %498 = vmatpush1.xpose.msra.mxu0 %v497
        %499 = vmatprep.subr.mxu0 0.0
        %v500 = vand.u32 %v186, 4294901760
        %v501 = vsub.f32 %v186, %v500
        %502 = vmatpush1.xpose.msra.mxu0 %v501
        %503 = vmatprep.subr.mxu0 0.0
        %v504 = vand.u32 %v185, 4294901760
        %v505 = vsub.f32 %v185, %v504
        %506 = vmatpush1.xpose.msra.mxu0 %v505
        %507 = vmatprep.subr.mxu0 0.0
        %508 = vmatpush2.xpose.msra.mxu0 0.0
        %509 = vmatprep.subr.mxu0 0.0
        %510 = vmatpush2.xpose.msra.mxu0 0.0
        %511 = vmatprep.subr.mxu0 0.0
        %512 = vmatpush2.xpose.msra.mxu0 0.0
        %513 = vmatprep.subr.mxu0 0.0
        %514 = vmatpush2.xpose.msra.mxu0 0.0
        %515 = vmatprep.subr.mxu0 0.0
        %516 = vmatpush2.xpose.msra.mxu0 0.0
        %517 = vmatprep.subr.mxu0 0.0
        %518 = vmatpush2.xpose.msra.mxu0 0.0
        %519 = vmatprep.subr.mxu0 0.0
        %520 = vmatpush2.xpose.msra.mxu0 0.0
        %521 = vmatprep.subr.mxu0 0.0
        %522 = vmatpush2.xpose.msra.mxu0 0.0
        %523 = vmatprep.subr.mxu0 0.0
        %524 = vmatpush2.xpose.msra.mxu0 0.0
        %525 = vmatprep.subr.mxu0 0.0
        %526 = vmatpush2.xpose.msra.mxu0 0.0
        %527 = vmatprep.subr.mxu0 0.0
        %528 = vmatpush2.xpose.msra.mxu0 0.0
        %529 = vmatprep.subr.mxu0 0.0
        %530 = vmatpush2.xpose.msra.mxu0 0.0
        %531 = vmatprep.subr.mxu0 0.0
        %532 = vmatpush2.xpose.msra.mxu0 0.0
        %533 = vmatprep.subr.mxu0 0.0
        %534 = vmatpush2.xpose.msra.mxu0 0.0
        %535 = vmatprep.subr.mxu0 0.0
        %536 = vmatpush2.xpose.msra.mxu0 0.0
        %537 = vmatprep.subr.mxu0 0.0
        %538 = vmatpush2.xpose.msra.mxu0 0.0
        %539 = vmatprep.mubr.f32.mxu0 0.0
        %v540 = vand.u32 %v184, 4294901760
        %v541 = vsub.f32 %v184, %v540
        %542 = vmatmul.mubr.f32.gmra.mxu0 %v541
        %v543 = vpop.f32.mrf.mxu0
        %v544 = vadd.f32 %v440, %v543
        %v545 = vpop.f32.mrf.mxu0
        %546 = vdwg.mxu0
        %547 = vmatprep.subr.mxu0 0.0
        %v548 = vand.u32 %v200, 4294901760
        %549 = vmatpush1.xpose.msra.mxu0 %v548
        %550 = vmatprep.subr.mxu0 0.0
        %v551 = vand.u32 %v199, 4294901760
        %552 = vmatpush1.xpose.msra.mxu0 %v551
        %553 = vmatprep.subr.mxu0 0.0
        %v554 = vand.u32 %v198, 4294901760
        %555 = vmatpush1.xpose.msra.mxu0 %v554
        %556 = vmatprep.subr.mxu0 0.0
        %v557 = vand.u32 %v197, 4294901760
        %558 = vmatpush1.xpose.msra.mxu0 %v557
        %559 = vmatprep.subr.mxu0 0.0
        %v560 = vand.u32 %v196, 4294901760
        %561 = vmatpush1.xpose.msra.mxu0 %v560
        %562 = vmatprep.subr.mxu0 0.0
        %v563 = vand.u32 %v195, 4294901760
        %564 = vmatpush1.xpose.msra.mxu0 %v563
        %565 = vmatprep.subr.mxu0 0.0
        %v566 = vand.u32 %v194, 4294901760
        %567 = vmatpush1.xpose.msra.mxu0 %v566
        %568 = vmatprep.subr.mxu0 0.0
        %v569 = vand.u32 %v193, 4294901760
        %570 = vmatpush1.xpose.msra.mxu0 %v569
        %571 = vmatprep.subr.mxu0 0.0
        %v572 = vand.u32 %v192, 4294901760
        %573 = vmatpush1.xpose.msra.mxu0 %v572
        %574 = vmatprep.subr.mxu0 0.0
        %v575 = vand.u32 %v191, 4294901760
        %576 = vmatpush1.xpose.msra.mxu0 %v575
        %577 = vmatprep.subr.mxu0 0.0
        %v578 = vand.u32 %v190, 4294901760
        %579 = vmatpush1.xpose.msra.mxu0 %v578
        %580 = vmatprep.subr.mxu0 0.0
        %v581 = vand.u32 %v189, 4294901760
        %582 = vmatpush1.xpose.msra.mxu0 %v581
        %583 = vmatprep.subr.mxu0 0.0
        %v584 = vand.u32 %v188, 4294901760
        %585 = vmatpush1.xpose.msra.mxu0 %v584
        %586 = vmatprep.subr.mxu0 0.0
        %v587 = vand.u32 %v187, 4294901760
        %588 = vmatpush1.xpose.msra.mxu0 %v587
        %589 = vmatprep.subr.mxu0 0.0
        %v590 = vand.u32 %v186, 4294901760
        %591 = vmatpush1.xpose.msra.mxu0 %v590
        %592 = vmatprep.subr.mxu0 0.0
        %v593 = vand.u32 %v185, 4294901760
        %594 = vmatpush1.xpose.msra.mxu0 %v593
        %595 = vmatprep.subr.mxu0 0.0
        %596 = vmatpush2.xpose.msra.mxu0 0.0
        %597 = vmatprep.subr.mxu0 0.0
        %598 = vmatpush2.xpose.msra.mxu0 0.0
        %599 = vmatprep.subr.mxu0 0.0
        %600 = vmatpush2.xpose.msra.mxu0 0.0
        %601 = vmatprep.subr.mxu0 0.0
        %602 = vmatpush2.xpose.msra.mxu0 0.0
        %603 = vmatprep.subr.mxu0 0.0
        %604 = vmatpush2.xpose.msra.mxu0 0.0
        %605 = vmatprep.subr.mxu0 0.0
        %606 = vmatpush2.xpose.msra.mxu0 0.0
        %607 = vmatprep.subr.mxu0 0.0
        %608 = vmatpush2.xpose.msra.mxu0 0.0
        %609 = vmatprep.subr.mxu0 0.0
        %610 = vmatpush2.xpose.msra.mxu0 0.0
        %611 = vmatprep.subr.mxu0 0.0
        %612 = vmatpush2.xpose.msra.mxu0 0.0
        %613 = vmatprep.subr.mxu0 0.0
        %614 = vmatpush2.xpose.msra.mxu0 0.0
        %615 = vmatprep.subr.mxu0 0.0
        %616 = vmatpush2.xpose.msra.mxu0 0.0
        %617 = vmatprep.subr.mxu0 0.0
        %618 = vmatpush2.xpose.msra.mxu0 0.0
        %619 = vmatprep.subr.mxu0 0.0
        %620 = vmatpush2.xpose.msra.mxu0 0.0
        %621 = vmatprep.subr.mxu0 0.0
        %622 = vmatpush2.xpose.msra.mxu0 0.0
        %623 = vmatprep.subr.mxu0 0.0
        %624 = vmatpush2.xpose.msra.mxu0 0.0
        %625 = vmatprep.subr.mxu0 0.0
        %626 = vmatpush2.xpose.msra.mxu0 0.0
        %627 = vmatprep.mubr.f32.mxu0 0.0
        %v628 = vand.u32 %v184, 4294901760
        %v629 = vsub.f32 %v184, %v628
        %v630 = vand.u32 %v629, 4294901760
        %631 = vmatmul.mubr.f32.gmra.mxu0 %v630
        %v632 = vpop.f32.mrf.mxu0
        %v633 = vadd.f32 %v544, %v632
        %v634 = vpop.f32.mrf.mxu0
        %635 = vdwg.mxu0
        %636 = vmatprep.subr.mxu0 0.0
        %v637 = vand.u32 %v200, 4294901760
        %v638 = vsub.f32 %v200, %v637
        %v639 = vand.u32 %v638, 4294901760
        %640 = vmatpush1.xpose.msra.mxu0 %v639
        %641 = vmatprep.subr.mxu0 0.0
        %v642 = vand.u32 %v199, 4294901760
        %v643 = vsub.f32 %v199, %v642
        %v644 = vand.u32 %v643, 4294901760
        %645 = vmatpush1.xpose.msra.mxu0 %v644
        %646 = vmatprep.subr.mxu0 0.0
        %v647 = vand.u32 %v198, 4294901760
        %v648 = vsub.f32 %v198, %v647
        %v649 = vand.u32 %v648, 4294901760
        %650 = vmatpush1.xpose.msra.mxu0 %v649
        %651 = vmatprep.subr.mxu0 0.0
        %v652 = vand.u32 %v197, 4294901760
        %v653 = vsub.f32 %v197, %v652
        %v654 = vand.u32 %v653, 4294901760
        %655 = vmatpush1.xpose.msra.mxu0 %v654
        %656 = vmatprep.subr.mxu0 0.0
        %v657 = vand.u32 %v196, 4294901760
        %v658 = vsub.f32 %v196, %v657
        %v659 = vand.u32 %v658, 4294901760
        %660 = vmatpush1.xpose.msra.mxu0 %v659
        %661 = vmatprep.subr.mxu0 0.0
        %v662 = vand.u32 %v195, 4294901760
        %v663 = vsub.f32 %v195, %v662
        %v664 = vand.u32 %v663, 4294901760
        %665 = vmatpush1.xpose.msra.mxu0 %v664
        %666 = vmatprep.subr.mxu0 0.0
        %v667 = vand.u32 %v194, 4294901760
        %v668 = vsub.f32 %v194, %v667
        %v669 = vand.u32 %v668, 4294901760
        %670 = vmatpush1.xpose.msra.mxu0 %v669
        %671 = vmatprep.subr.mxu0 0.0
        %v672 = vand.u32 %v193, 4294901760
        %v673 = vsub.f32 %v193, %v672
        %v674 = vand.u32 %v673, 4294901760
        %675 = vmatpush1.xpose.msra.mxu0 %v674
        %676 = vmatprep.subr.mxu0 0.0
        %v677 = vand.u32 %v192, 4294901760
        %v678 = vsub.f32 %v192, %v677
        %v679 = vand.u32 %v678, 4294901760
        %680 = vmatpush1.xpose.msra.mxu0 %v679
        %681 = vmatprep.subr.mxu0 0.0
        %v682 = vand.u32 %v191, 4294901760
        %v683 = vsub.f32 %v191, %v682
        %v684 = vand.u32 %v683, 4294901760
        %685 = vmatpush1.xpose.msra.mxu0 %v684
        %686 = vmatprep.subr.mxu0 0.0
        %v687 = vand.u32 %v190, 4294901760
        %v688 = vsub.f32 %v190, %v687
        %v689 = vand.u32 %v688, 4294901760
        %690 = vmatpush1.xpose.msra.mxu0 %v689
        %691 = vmatprep.subr.mxu0 0.0
        %v692 = vand.u32 %v189, 4294901760
        %v693 = vsub.f32 %v189, %v692
        %v694 = vand.u32 %v693, 4294901760
        %695 = vmatpush1.xpose.msra.mxu0 %v694
        %696 = vmatprep.subr.mxu0 0.0
        %v697 = vand.u32 %v188, 4294901760
        %v698 = vsub.f32 %v188, %v697
        %v699 = vand.u32 %v698, 4294901760
        %700 = vmatpush1.xpose.msra.mxu0 %v699
        %701 = vmatprep.subr.mxu0 0.0
        %v702 = vand.u32 %v187, 4294901760
        %v703 = vsub.f32 %v187, %v702
        %v704 = vand.u32 %v703, 4294901760
        %705 = vmatpush1.xpose.msra.mxu0 %v704
        %706 = vmatprep.subr.mxu0 0.0
        %v707 = vand.u32 %v186, 4294901760
        %v708 = vsub.f32 %v186, %v707
        %v709 = vand.u32 %v708, 4294901760
        %710 = vmatpush1.xpose.msra.mxu0 %v709
        %711 = vmatprep.subr.mxu0 0.0
        %v712 = vand.u32 %v185, 4294901760
        %v713 = vsub.f32 %v185, %v712
        %v714 = vand.u32 %v713, 4294901760
        %715 = vmatpush1.xpose.msra.mxu0 %v714
        %716 = vmatprep.subr.mxu0 0.0
        %717 = vmatpush2.xpose.msra.mxu0 0.0
        %718 = vmatprep.subr.mxu0 0.0
        %719 = vmatpush2.xpose.msra.mxu0 0.0
        %720 = vmatprep.subr.mxu0 0.0
        %721 = vmatpush2.xpose.msra.mxu0 0.0
        %722 = vmatprep.subr.mxu0 0.0
        %723 = vmatpush2.xpose.msra.mxu0 0.0
        %724 = vmatprep.subr.mxu0 0.0
        %725 = vmatpush2.xpose.msra.mxu0 0.0
        %726 = vmatprep.subr.mxu0 0.0
        %727 = vmatpush2.xpose.msra.mxu0 0.0
        %728 = vmatprep.subr.mxu0 0.0
        %729 = vmatpush2.xpose.msra.mxu0 0.0
        %730 = vmatprep.subr.mxu0 0.0
        %731 = vmatpush2.xpose.msra.mxu0 0.0
        %732 = vmatprep.subr.mxu0 0.0
        %733 = vmatpush2.xpose.msra.mxu0 0.0
        %734 = vmatprep.subr.mxu0 0.0
        %735 = vmatpush2.xpose.msra.mxu0 0.0
        %736 = vmatprep.subr.mxu0 0.0
        %737 = vmatpush2.xpose.msra.mxu0 0.0
        %738 = vmatprep.subr.mxu0 0.0
        %739 = vmatpush2.xpose.msra.mxu0 0.0
        %740 = vmatprep.subr.mxu0 0.0
        %741 = vmatpush2.xpose.msra.mxu0 0.0
        %742 = vmatprep.subr.mxu0 0.0
        %743 = vmatpush2.xpose.msra.mxu0 0.0
        %744 = vmatprep.subr.mxu0 0.0
        %745 = vmatpush2.xpose.msra.mxu0 0.0
        %746 = vmatprep.subr.mxu0 0.0
        %747 = vmatpush2.xpose.msra.mxu0 0.0
        %748 = vmatprep.mubr.f32.mxu0 0.0
        %v749 = vand.u32 %v184, 4294901760
        %750 = vmatmul.mubr.f32.gmra.mxu0 %v749
        %v751 = vpop.f32.mrf.mxu0
        %v752 = vadd.f32 %v633, %v751
        %v753 = vpop.f32.mrf.mxu0
        %754 = vdwg.mxu0
        %755 = vmatprep.subr.mxu0 0.0
        %v756 = vand.u32 %v200, 4294901760
        %757 = vmatpush1.xpose.msra.mxu0 %v756
        %758 = vmatprep.subr.mxu0 0.0
        %v759 = vand.u32 %v199, 4294901760
        %760 = vmatpush1.xpose.msra.mxu0 %v759
        %761 = vmatprep.subr.mxu0 0.0
        %v762 = vand.u32 %v198, 4294901760
        %763 = vmatpush1.xpose.msra.mxu0 %v762
        %764 = vmatprep.subr.mxu0 0.0
        %v765 = vand.u32 %v197, 4294901760
        %766 = vmatpush1.xpose.msra.mxu0 %v765
        %767 = vmatprep.subr.mxu0 0.0
        %v768 = vand.u32 %v196, 4294901760
        %769 = vmatpush1.xpose.msra.mxu0 %v768
        %770 = vmatprep.subr.mxu0 0.0
        %v771 = vand.u32 %v195, 4294901760
        %772 = vmatpush1.xpose.msra.mxu0 %v771
        %773 = vmatprep.subr.mxu0 0.0
        %v774 = vand.u32 %v194, 4294901760
        %775 = vmatpush1.xpose.msra.mxu0 %v774
        %776 = vmatprep.subr.mxu0 0.0
        %v777 = vand.u32 %v193, 4294901760
        %778 = vmatpush1.xpose.msra.mxu0 %v777
        %779 = vmatprep.subr.mxu0 0.0
        %v780 = vand.u32 %v192, 4294901760
        %781 = vmatpush1.xpose.msra.mxu0 %v780
        %782 = vmatprep.subr.mxu0 0.0
        %v783 = vand.u32 %v191, 4294901760
        %784 = vmatpush1.xpose.msra.mxu0 %v783
        %785 = vmatprep.subr.mxu0 0.0
        %v786 = vand.u32 %v190, 4294901760
        %787 = vmatpush1.xpose.msra.mxu0 %v786
        %788 = vmatprep.subr.mxu0 0.0
        %v789 = vand.u32 %v189, 4294901760
        %790 = vmatpush1.xpose.msra.mxu0 %v789
        %791 = vmatprep.subr.mxu0 0.0
        %v792 = vand.u32 %v188, 4294901760
        %793 = vmatpush1.xpose.msra.mxu0 %v792
        %794 = vmatprep.subr.mxu0 0.0
        %v795 = vand.u32 %v187, 4294901760
        %796 = vmatpush1.xpose.msra.mxu0 %v795
        %797 = vmatprep.subr.mxu0 0.0
        %v798 = vand.u32 %v186, 4294901760
        %799 = vmatpush1.xpose.msra.mxu0 %v798
        %800 = vmatprep.subr.mxu0 0.0
        %v801 = vand.u32 %v185, 4294901760
        %802 = vmatpush1.xpose.msra.mxu0 %v801
        %803 = vmatprep.subr.mxu0 0.0
        %804 = vmatpush2.xpose.msra.mxu0 0.0
        %805 = vmatprep.subr.mxu0 0.0
        %806 = vmatpush2.xpose.msra.mxu0 0.0
        %807 = vmatprep.subr.mxu0 0.0
        %808 = vmatpush2.xpose.msra.mxu0 0.0
        %809 = vmatprep.subr.mxu0 0.0
        %810 = vmatpush2.xpose.msra.mxu0 0.0
        %811 = vmatprep.subr.mxu0 0.0
        %812 = vmatpush2.xpose.msra.mxu0 0.0
        %813 = vmatprep.subr.mxu0 0.0
        %814 = vmatpush2.xpose.msra.mxu0 0.0
        %815 = vmatprep.subr.mxu0 0.0
        %816 = vmatpush2.xpose.msra.mxu0 0.0
        %817 = vmatprep.subr.mxu0 0.0
        %818 = vmatpush2.xpose.msra.mxu0 0.0
        %819 = vmatprep.subr.mxu0 0.0
        %820 = vmatpush2.xpose.msra.mxu0 0.0
        %821 = vmatprep.subr.mxu0 0.0
        %822 = vmatpush2.xpose.msra.mxu0 0.0
        %823 = vmatprep.subr.mxu0 0.0
        %824 = vmatpush2.xpose.msra.mxu0 0.0
        %825 = vmatprep.subr.mxu0 0.0
        %826 = vmatpush2.xpose.msra.mxu0 0.0
        %827 = vmatprep.subr.mxu0 0.0
        %828 = vmatpush2.xpose.msra.mxu0 0.0
        %829 = vmatprep.subr.mxu0 0.0
        %830 = vmatpush2.xpose.msra.mxu0 0.0
        %831 = vmatprep.subr.mxu0 0.0
        %832 = vmatpush2.xpose.msra.mxu0 0.0
        %833 = vmatprep.subr.mxu0 0.0
        %834 = vmatpush2.xpose.msra.mxu0 0.0
        %835 = vmatprep.mubr.f32.mxu0 0.0
        %v836 = vand.u32 %v184, 4294901760
        %837 = vmatmul.mubr.f32.gmra.mxu0 %v836
        %v838 = vpop.f32.mrf.mxu0
        %v839 = vadd.f32 %v752, %v838
        %v840 = vpop.f32.mrf.mxu0
        %841 = vdwg.mxu0
        %842 = vmax.xlane.f32.xlu0 %v839
        %v843 = vpop.xlane.xlu0 %842
        %v844 = vsub.f32 %v839, %v843
        %v845 = vmul.f32 %v844, 1.442695
        %v846 = vpow.pop %v845
        %847 = vadd.xlane.f32.xlu0 %v846
        %v848 = vpop.xlane.xlu0 %847
        %v849 = vsub.f32 0.0, %v843
        %v850 = vmul.f32 %v849, 1.442695
        %v851 = vpow.pop %v850
        %v852 = vmul.f32 %v851, 120.0
        %v853 = vsub.f32 %v848, %v852
        %v854 = vmax.f32 %v853, 1.1754944e-38
        %v855 = vrcp.pop %v854
        %v856 = vmul.f32 %v846, %v855
        %vm857 = vcmask 64512
        %858 = vst.msk [vmem:[%s171] sm:$0xff] %vm857, %v856
        %s859 = sand.u32 %s92, 1
        %s860 = scalar_lea.sflag [#allocation3], %s859
        %s861 = sand.u32 %s92, 1
        %s862 = smul.addr %s861, 8
        %s863 = scalar_lea.vmem [#allocation2], %s862
        // Predicated region
        $region29: #{attention_probs.1} parent=27 // pred_check
          %p864 = pneg %p102
        $region30: #{attention_probs.1} parent=27 // pred_check_branch
          %866 = sbr.rel (%p864) target = $region32
        $region31: #{attention_probs.1} parent=27 // pred_region
          %s868 = ssub.s32 128, 128
          %869 = vsyncadd %s860, %s868
          %s870 = sadd.s32 %s21, %s20
          %s871 = smul.addr %s870, 128
          %s872 = scalar_lea.hbm %s2, %s871
          %s874 = sshll.u32 %s863, 4
          %s875 = int_to_ptr.vmem [resolvable:$true] %s874
          %877 = dma.vmem_to_hbm [thread:$0]  %s875, 128, %s872, %s860
        $region32: #{attention_probs.1} parent=27 // pred_fallthru
          _
      $region28: #{attention_probs.1} parent=5 // pred_fallthru
        _
      %p878 = scmp.le.s32.totalorder 2, %s11
      // Predicated region
      $region33: #{attention_probs.1} parent=5 // pred_check
        %p879 = pneg %p878
      $region34: #{attention_probs.1} parent=5 // pred_check_branch
        %881 = sbr.rel (%p879) target = $region36
      $region35: #{attention_probs.1} parent=5 // pred_region
        %s882 = ssub.s32 %s11, 2
        // Predicated region
        $region37: #{attention_probs.1} parent=35 // pred_check
          %p883 = pneg %p108
        $region38: #{attention_probs.1} parent=35 // pred_check_branch
          %885 = sbr.rel (%p883) target = $region40
        $region39: #{attention_probs.1} parent=35 // pred_region
          %s886 = sand.u32 %s93, 1
          %s887 = scalar_lea.sflag [#allocation3], %s886
          %s888 = sand.u32 %s93, 1
          %s889 = smul.addr %s888, 8
          %s890 = scalar_lea.vmem [#allocation2], %s889
          %891 = dma.done %s887, 128
        $region40: #{attention_probs.1} parent=35 // pred_fallthru
          _
      $region36: #{attention_probs.1} parent=5 // pred_fallthru
        _
    $region6: #{attention_probs.1} parent=1 // loop_footer
      %s15 = sadd.s32 1, %s11
    $region7: #{attention_probs.1} parent=1 // loop_footer_branch
      %10 = sbr.rel target = $region3
    $region8: #{attention_probs.1} parent=1 // loop_exit
      _
    %892 = vsyncpa [#allocation3], 1
    %s893 = scalar_lea.sflag [#allocation3], 1
    %894 = vsyncpa %s893, 1

</llo_original>
